<compile_context>
chip_gen: v6e
topology: v6e:2x2x1
jax: 0.10.0
libtpu: 0.0.40
codegen_flags: <defaults>
</compile_context>

<pallas_src>
import functools

import jax
import jax.numpy as jnp
from jax.experimental import pallas as pl
from jax.experimental.pallas import tpu as pltpu

# ---------------- model dimensions (the "config") ----------------
IN_FEATURES = 32
LATENT_SIZE = 8
Y_SIZE = 1
ENC_HIDDEN = [64, 32]
DEC_HIDDEN = [32, 64]
LEAKY_SLOPE = 0.01  # nn.LeakyReLU default


def _leaky_relu(x):
    return jnp.where(x >= 0, x, LEAKY_SLOPE * x)


def cvae_kernel(
    x_ref, y_ref, eps_ref,
    ew0x_ref, ew0y_ref, eb0_ref, ew1_ref, eb1_ref,
    ew2m_ref, eb2m_ref, ew2v_ref, eb2v_ref,
    dw0z_ref, dw0y_ref, db0_ref, dw1_ref, db1_ref, dw2_ref, db2_ref,
    mu_prime_ref, head_ref,
):
    x = x_ref[...]            # (bb, IN_FEATURES)
    y = y_ref[...]            # (bb, 1)
    eps = eps_ref[...]        # (bb, LATENT_SIZE)

    # ----- encoder MLP (concat-free first layer) -----
    h = jnp.dot(x, ew0x_ref[...], preferred_element_type=jnp.float32)
    h = _leaky_relu(h + y * ew0y_ref[...] + eb0_ref[...])
    # dropout_rate = 0.0 -> identity, use_batch_norm = False -> identity
    h = jnp.dot(h, ew1_ref[...], preferred_element_type=jnp.float32) + eb1_ref[...]
    h = _leaky_relu(h)

    # direct mu / log_var heads (no lane-offset slice)
    mu = jnp.dot(h, ew2m_ref[...], preferred_element_type=jnp.float32) + eb2m_ref[...]
    log_var = jnp.dot(h, ew2v_ref[...], preferred_element_type=jnp.float32) + eb2v_ref[...]

    # ----- reparameterization: z = mu + eps * exp(0.5 * log_var) -----
    z = mu + eps * jnp.exp(0.5 * log_var)

    # ----- decoder MLP (concat-free first layer) -----
    h = jnp.dot(z, dw0z_ref[...], preferred_element_type=jnp.float32)
    h = _leaky_relu(h + y * dw0y_ref[...] + db0_ref[...])
    h = jnp.dot(h, dw1_ref[...], preferred_element_type=jnp.float32) + db1_ref[...]
    h = _leaky_relu(h)
    h = jnp.dot(h, dw2_ref[...], preferred_element_type=jnp.float32) + db2_ref[...]
    mu_prime_ref[...] = jax.nn.sigmoid(h)

    # packed (bb, 2*LATENT_SIZE) output: [mu | log_var], split in the wrapper
    head_ref[:, :LATENT_SIZE] = mu
    head_ref[:, LATENT_SIZE:] = log_var


@functools.partial(jax.jit, static_argnames=("block_b",))
def cvae_forward(x, y, eps, params, block_b=512):
    """x: (B, IN_FEATURES) f32, y: (B,) f32, eps: (B, LATENT_SIZE) f32."""
    B = x.shape[0]
    y2d = y.reshape(B, 1).astype(jnp.float32)  # y.unsqueeze(1)

    bb = min(block_b, B)
    Bp = ((B + bb - 1) // bb) * bb  # pad batch up to a multiple of the block
    if Bp != B:
        pad = Bp - B
        x = jnp.pad(x, ((0, pad), (0, 0)))
        y2d = jnp.pad(y2d, ((0, pad), (0, 0)))
        eps = jnp.pad(eps, ((0, pad), (0, 0)))

    grid = (Bp // bb,)

    def batch_spec(feat):
        return pl.BlockSpec((bb, feat), lambda i: (i, 0))

    def resident_spec(arr):
        # full-array block, constant index_map -> fetched once, stays in VMEM
        return pl.BlockSpec(arr.shape, lambda i: (0, 0))

    in_specs = [
        batch_spec(IN_FEATURES),   # x
        batch_spec(Y_SIZE),        # y
        batch_spec(LATENT_SIZE),   # eps
    ] + [resident_spec(p) for p in params]

    out_shapes = (
        jax.ShapeDtypeStruct((Bp, IN_FEATURES), jnp.float32),      # mu_prime_given_Y
        jax.ShapeDtypeStruct((Bp, 2 * LATENT_SIZE), jnp.float32),  # [mu | log_var]
    )
    out_specs = (
        batch_spec(IN_FEATURES),
        batch_spec(2 * LATENT_SIZE),
    )

    mu_prime, head = pl.pallas_call(
        cvae_kernel,
        grid=grid,
        out_shape=out_shapes,
        in_specs=in_specs,
        out_specs=out_specs,
        compiler_params=pltpu.CompilerParams(
            dimension_semantics=("parallel",)),
    )(x, y2d, eps, *params)

    if Bp != B:
        mu_prime = mu_prime[:B]
        head = head[:B]
    mu = head[:, :LATENT_SIZE]
    log_var = head[:, LATENT_SIZE:]
    return mu_prime, mu, log_var


def init_params(key):
    """Deterministic param init; weights stored as (in, out), biases as (1, out).

    First encoder / decoder weights are stored split (W_x, w_y) / (W_z, w_y);
    the encoder head is stored split (W_mu, b_mu, W_logvar, b_logvar).
    Order matches cvae_kernel's argument order.
    """
    def linear(key, d_in, d_out, fan_in=None):
        fan_in = d_in if fan_in is None else fan_in
        kw, kb = jax.random.split(key)
        bound = 1.0 / jnp.sqrt(fan_in)
        w = jax.random.uniform(kw, (d_in, d_out), jnp.float32, -bound, bound)
        b = jax.random.uniform(kb, (1, d_out), jnp.float32, -bound, bound)
        return w, b

    keys = jax.random.split(key, 8)

    # encoder layer 0: (IN_FEATURES + Y_SIZE) -> 64, stored as split W_x / w_y
    ew0, eb0 = linear(keys[0], IN_FEATURES + Y_SIZE, ENC_HIDDEN[0])
    ew0x, ew0y = ew0[:IN_FEATURES], ew0[IN_FEATURES:]
    # encoder layer 1: 64 -> 32
    ew1, eb1 = linear(keys[1], ENC_HIDDEN[0], ENC_HIDDEN[1])
    # encoder head: 32 -> 2*LATENT_SIZE, stored as split mu / log_var heads
    ew2, eb2 = linear(keys[2], ENC_HIDDEN[1], 2 * LATENT_SIZE)
    ew2m, ew2v = ew2[:, :LATENT_SIZE], ew2[:, LATENT_SIZE:]
    eb2m, eb2v = eb2[:, :LATENT_SIZE], eb2[:, LATENT_SIZE:]

    # decoder layer 0: (LATENT_SIZE + Y_SIZE) -> 32, stored as split W_z / w_y
    dw0, db0 = linear(keys[3], LATENT_SIZE + Y_SIZE, DEC_HIDDEN[0])
    dw0z, dw0y = dw0[:LATENT_SIZE], dw0[LATENT_SIZE:]
    # decoder layer 1: 32 -> 64
    dw1, db1 = linear(keys[4], DEC_HIDDEN[0], DEC_HIDDEN[1])
    # decoder output: 64 -> IN_FEATURES
    dw2, db2 = linear(keys[5], DEC_HIDDEN[1], IN_FEATURES)

    return [ew0x, ew0y, eb0, ew1, eb1, ew2m, eb2m, ew2v, eb2v,
            dw0z, dw0y, db0, dw1, db1, dw2, db2]


def cvae_reference(x, y, eps, params):
    """Pure-JAX reference (uses the explicit concatenations, like PyTorch)."""
    (ew0x, ew0y, eb0, ew1, eb1, ew2m, eb2m, ew2v, eb2v,
     dw0z, dw0y, db0, dw1, db1, dw2, db2) = params
    y2d = y.reshape(-1, 1).astype(jnp.float32)
    xy = jnp.concatenate([x, y2d], axis=1)
    ew0 = jnp.concatenate([ew0x, ew0y], axis=0)
    h = _leaky_relu(xy @ ew0 + eb0)
    h = _leaky_relu(h @ ew1 + eb1)
    mu = h @ ew2m + eb2m
    log_var = h @ ew2v + eb2v
    z = mu + eps * jnp.exp(0.5 * log_var)
    zy = jnp.concatenate([z, y2d], axis=1)
    dw0 = jnp.concatenate([dw0z, dw0y], axis=0)
    h = _leaky_relu(zy @ dw0 + db0)
    h = _leaky_relu(h @ dw1 + db1)
    mu_prime = jax.nn.sigmoid(h @ dw2 + db2)
    return mu_prime, mu, log_var


if __name__ == "__main__":
    key = jax.random.PRNGKey(0)
    k_param, k_x, k_y, k_eps = jax.random.split(key, 4)
    params = init_params(k_param)

    # --- small single-block case (B = 8, one grid step) ---
    B = 8
    x = jax.random.normal(k_x, (B, IN_FEATURES), jnp.float32)
    y = jax.random.bernoulli(k_y, 0.5, (B,)).astype(jnp.float32)  # condition label
    eps = jax.random.normal(k_eps, (B, LATENT_SIZE), jnp.float32)  # ~ torch.randn_like

    mu_prime, mu, log_var = cvae_forward(x, y, eps, params)
    jax.block_until_ready((mu_prime, mu, log_var))

    mp_ref, mu_ref_, lv_ref = cvae_reference(x, y, eps, params)
    assert mu_prime.shape == (B, IN_FEATURES)
    assert mu.shape == (B, LATENT_SIZE)
    assert log_var.shape == (B, LATENT_SIZE)
    assert bool(jnp.all(jnp.isfinite(mu_prime)))
    assert bool(jnp.all((mu_prime >= 0.0) & (mu_prime <= 1.0)))
    assert bool(jnp.allclose(mu_prime, mp_ref, rtol=1e-5, atol=1e-5))
    assert bool(jnp.allclose(mu, mu_ref_, rtol=1e-5, atol=1e-5))
    assert bool(jnp.allclose(log_var, lv_ref, rtol=1e-5, atol=1e-5))

    # --- multi-block case with padding (B = 20, block_b = 8 -> grid of 3) ---
    B2 = 20
    k_x2, k_y2, k_e2 = jax.random.split(jax.random.PRNGKey(1), 3)
    x2 = jax.random.normal(k_x2, (B2, IN_FEATURES), jnp.float32)
    y2 = jax.random.bernoulli(k_y2, 0.5, (B2,)).astype(jnp.float32)
    eps2 = jax.random.normal(k_e2, (B2, LATENT_SIZE), jnp.float32)

    mp2, mu2, lv2 = cvae_forward(x2, y2, eps2, params, block_b=8)
    jax.block_until_ready((mp2, mu2, lv2))
    mp2_ref, mu2_ref, lv2_ref = cvae_reference(x2, y2, eps2, params)
    assert mp2.shape == (B2, IN_FEATURES)
    assert bool(jnp.allclose(mp2, mp2_ref, rtol=1e-5, atol=1e-5))
    assert bool(jnp.allclose(mu2, mu2_ref, rtol=1e-5, atol=1e-5))
    assert bool(jnp.allclose(lv2, lv2_ref, rtol=1e-5, atol=1e-5))

    print("KERNEL_OK")
</pallas_src>

<mosaic_0001>
module attributes {stable_mosaic.version = 11 : i64} {
  func.func @cvae_kernel(%arg0: i32, %arg1: memref<8x32xf32, #tpu.memory_space<vmem>>, %arg2: memref<8x1xf32, #tpu.memory_space<vmem>>, %arg3: memref<8x8xf32, #tpu.memory_space<vmem>>, %arg4: memref<32x64xf32, #tpu.memory_space<vmem>>, %arg5: memref<1x64xf32, #tpu.memory_space<vmem>>, %arg6: memref<1x64xf32, #tpu.memory_space<vmem>>, %arg7: memref<64x32xf32, #tpu.memory_space<vmem>>, %arg8: memref<1x32xf32, #tpu.memory_space<vmem>>, %arg9: memref<32x8xf32, #tpu.memory_space<vmem>>, %arg10: memref<1x8xf32, #tpu.memory_space<vmem>>, %arg11: memref<32x8xf32, #tpu.memory_space<vmem>>, %arg12: memref<1x8xf32, #tpu.memory_space<vmem>>, %arg13: memref<8x32xf32, #tpu.memory_space<vmem>>, %arg14: memref<1x32xf32, #tpu.memory_space<vmem>>, %arg15: memref<1x32xf32, #tpu.memory_space<vmem>>, %arg16: memref<32x64xf32, #tpu.memory_space<vmem>>, %arg17: memref<1x64xf32, #tpu.memory_space<vmem>>, %arg18: memref<64x32xf32, #tpu.memory_space<vmem>>, %arg19: memref<1x32xf32, #tpu.memory_space<vmem>>, %arg20: memref<8x32xf32, #tpu.memory_space<vmem>>, %arg21: memref<8x16xf32, #tpu.memory_space<vmem>>) attributes {dimension_semantics = [#tpu.dimension_semantics<parallel>], iteration_bounds = array<i64: 1>, scalar_prefetch = 0 : i64, scratch_operands = 0 : i64, tpu.core_type = #tpu.core_type<tc>, window_params = [{transform_indices = @transform_0, window_bounds = array<i64: 8, 32>}, {transform_indices = @transform_1, window_bounds = array<i64: 8, 1>}, {transform_indices = @transform_2, window_bounds = array<i64: 8, 8>}, {pipeline_mode = #tpu.pipeline_mode<synchronous>, transform_indices = @transform_3, window_bounds = array<i64: 32, 64>}, {pipeline_mode = #tpu.pipeline_mode<synchronous>, transform_indices = @transform_4, window_bounds = array<i64: 1, 64>}, {pipeline_mode = #tpu.pipeline_mode<synchronous>, transform_indices = @transform_5, window_bounds = array<i64: 1, 64>}, {pipeline_mode = #tpu.pipeline_mode<synchronous>, transform_indices = @transform_6, window_bounds = array<i64: 64, 32>}, {pipeline_mode = #tpu.pipeline_mode<synchronous>, transform_indices = @transform_7, window_bounds = array<i64: 1, 32>}, {pipeline_mode = #tpu.pipeline_mode<synchronous>, transform_indices = @transform_8, window_bounds = array<i64: 32, 8>}, {pipeline_mode = #tpu.pipeline_mode<synchronous>, transform_indices = @transform_9, window_bounds = array<i64: 1, 8>}, {pipeline_mode = #tpu.pipeline_mode<synchronous>, transform_indices = @transform_10, window_bounds = array<i64: 32, 8>}, {pipeline_mode = #tpu.pipeline_mode<synchronous>, transform_indices = @transform_11, window_bounds = array<i64: 1, 8>}, {pipeline_mode = #tpu.pipeline_mode<synchronous>, transform_indices = @transform_12, window_bounds = array<i64: 8, 32>}, {pipeline_mode = #tpu.pipeline_mode<synchronous>, transform_indices = @transform_13, window_bounds = array<i64: 1, 32>}, {pipeline_mode = #tpu.pipeline_mode<synchronous>, transform_indices = @transform_14, window_bounds = array<i64: 1, 32>}, {pipeline_mode = #tpu.pipeline_mode<synchronous>, transform_indices = @transform_15, window_bounds = array<i64: 32, 64>}, {pipeline_mode = #tpu.pipeline_mode<synchronous>, transform_indices = @transform_16, window_bounds = array<i64: 1, 64>}, {pipeline_mode = #tpu.pipeline_mode<synchronous>, transform_indices = @transform_17, window_bounds = array<i64: 64, 32>}, {pipeline_mode = #tpu.pipeline_mode<synchronous>, transform_indices = @transform_18, window_bounds = array<i64: 1, 32>}, {transform_indices = @transform_19, window_bounds = array<i64: 8, 32>}, {transform_indices = @transform_20, window_bounds = array<i64: 8, 16>}]} {
    %c0 = arith.constant 0 : index
    %c0_0 = arith.constant 0 : index
    %0 = vector.load %arg1[%c0, %c0_0] : memref<8x32xf32, #tpu.memory_space<vmem>>, vector<8x32xf32>
    %c0_1 = arith.constant 0 : index
    %c0_2 = arith.constant 0 : index
    %1 = vector.load %arg2[%c0_1, %c0_2] : memref<8x1xf32, #tpu.memory_space<vmem>>, vector<8x1xf32>
    %c0_3 = arith.constant 0 : index
    %c0_4 = arith.constant 0 : index
    %2 = vector.load %arg3[%c0_3, %c0_4] : memref<8x8xf32, #tpu.memory_space<vmem>>, vector<8x8xf32>
    %c0_5 = arith.constant 0 : index
    %c0_6 = arith.constant 0 : index
    %3 = vector.load %arg4[%c0_5, %c0_6] : memref<32x64xf32, #tpu.memory_space<vmem>>, vector<32x64xf32>
    %cst = arith.constant dense<0.000000e+00> : vector<8x64xf32>
    %4 = tpu.matmul %0, %3, %cst {dimension_numbers = #tpu.dot_dimension_numbers<[1], [0], [0], [1], [0, 0, 1, 1], [], []>} : vector<8x32xf32>, vector<32x64xf32>, vector<8x64xf32> -> vector<8x64xf32>
    %c0_7 = arith.constant 0 : index
    %c0_8 = arith.constant 0 : index
    %5 = vector.load %arg5[%c0_7, %c0_8] : memref<1x64xf32, #tpu.memory_space<vmem>>, vector<1x64xf32>
    %6 = vector.broadcast %1 : vector<8x1xf32> to vector<8x64xf32>
    %7 = vector.broadcast %5 : vector<1x64xf32> to vector<8x64xf32>
    %8 = arith.mulf %6, %7 : vector<8x64xf32>
    %9 = arith.addf %4, %8 : vector<8x64xf32>
    %c0_9 = arith.constant 0 : index
    %c0_10 = arith.constant 0 : index
    %10 = vector.load %arg6[%c0_9, %c0_10] : memref<1x64xf32, #tpu.memory_space<vmem>>, vector<1x64xf32>
    %11 = vector.broadcast %10 : vector<1x64xf32> to vector<8x64xf32>
    %12 = arith.addf %9, %11 : vector<8x64xf32>
    %cst_11 = arith.constant 0.000000e+00 : f32
    %13 = vector.broadcast %cst_11 : f32 to vector<8x64xf32>
    %14 = arith.cmpf oge, %12, %13 : vector<8x64xf32>
    %cst_12 = arith.constant 0.00999999977 : f32
    %15 = vector.broadcast %cst_12 : f32 to vector<8x64xf32>
    %16 = arith.mulf %15, %12 : vector<8x64xf32>
    %17 = arith.select %14, %12, %16 : vector<8x64xi1>, vector<8x64xf32>
    %c0_13 = arith.constant 0 : index
    %c0_14 = arith.constant 0 : index
    %18 = vector.load %arg7[%c0_13, %c0_14] : memref<64x32xf32, #tpu.memory_space<vmem>>, vector<64x32xf32>
    %cst_15 = arith.constant dense<0.000000e+00> : vector<8x32xf32>
    %19 = tpu.matmul %17, %18, %cst_15 {dimension_numbers = #tpu.dot_dimension_numbers<[1], [0], [0], [1], [0, 0, 1, 1], [], []>} : vector<8x64xf32>, vector<64x32xf32>, vector<8x32xf32> -> vector<8x32xf32>
    %c0_16 = arith.constant 0 : index
    %c0_17 = arith.constant 0 : index
    %20 = vector.load %arg8[%c0_16, %c0_17] : memref<1x32xf32, #tpu.memory_space<vmem>>, vector<1x32xf32>
    %21 = vector.broadcast %20 : vector<1x32xf32> to vector<8x32xf32>
    %22 = arith.addf %19, %21 : vector<8x32xf32>
    %cst_18 = arith.constant 0.000000e+00 : f32
    %23 = vector.broadcast %cst_18 : f32 to vector<8x32xf32>
    %24 = arith.cmpf oge, %22, %23 : vector<8x32xf32>
    %cst_19 = arith.constant 0.00999999977 : f32
    %25 = vector.broadcast %cst_19 : f32 to vector<8x32xf32>
    %26 = arith.mulf %25, %22 : vector<8x32xf32>
    %27 = arith.select %24, %22, %26 : vector<8x32xi1>, vector<8x32xf32>
    %c0_20 = arith.constant 0 : index
    %c0_21 = arith.constant 0 : index
    %28 = vector.load %arg9[%c0_20, %c0_21] : memref<32x8xf32, #tpu.memory_space<vmem>>, vector<32x8xf32>
    %cst_22 = arith.constant dense<0.000000e+00> : vector<8x8xf32>
    %29 = tpu.matmul %27, %28, %cst_22 {dimension_numbers = #tpu.dot_dimension_numbers<[1], [0], [0], [1], [0, 0, 1, 1], [], []>} : vector<8x32xf32>, vector<32x8xf32>, vector<8x8xf32> -> vector<8x8xf32>
    %c0_23 = arith.constant 0 : index
    %c0_24 = arith.constant 0 : index
    %30 = vector.load %arg10[%c0_23, %c0_24] : memref<1x8xf32, #tpu.memory_space<vmem>>, vector<1x8xf32>
    %31 = vector.broadcast %30 : vector<1x8xf32> to vector<8x8xf32>
    %32 = arith.addf %29, %31 : vector<8x8xf32>
    %c0_25 = arith.constant 0 : index
    %c0_26 = arith.constant 0 : index
    %33 = vector.load %arg11[%c0_25, %c0_26] : memref<32x8xf32, #tpu.memory_space<vmem>>, vector<32x8xf32>
    %cst_27 = arith.constant dense<0.000000e+00> : vector<8x8xf32>
    %34 = tpu.matmul %27, %33, %cst_27 {dimension_numbers = #tpu.dot_dimension_numbers<[1], [0], [0], [1], [0, 0, 1, 1], [], []>} : vector<8x32xf32>, vector<32x8xf32>, vector<8x8xf32> -> vector<8x8xf32>
    %c0_28 = arith.constant 0 : index
    %c0_29 = arith.constant 0 : index
    %35 = vector.load %arg12[%c0_28, %c0_29] : memref<1x8xf32, #tpu.memory_space<vmem>>, vector<1x8xf32>
    %36 = vector.broadcast %35 : vector<1x8xf32> to vector<8x8xf32>
    %37 = arith.addf %34, %36 : vector<8x8xf32>
    %cst_30 = arith.constant 5.000000e-01 : f32
    %38 = vector.broadcast %cst_30 : f32 to vector<8x8xf32>
    %39 = arith.mulf %38, %37 : vector<8x8xf32>
    %40 = math.exp %39 : vector<8x8xf32>
    %41 = arith.mulf %2, %40 : vector<8x8xf32>
    %42 = arith.addf %32, %41 : vector<8x8xf32>
    %c0_31 = arith.constant 0 : index
    %c0_32 = arith.constant 0 : index
    %43 = vector.load %arg13[%c0_31, %c0_32] : memref<8x32xf32, #tpu.memory_space<vmem>>, vector<8x32xf32>
    %cst_33 = arith.constant dense<0.000000e+00> : vector<8x32xf32>
    %44 = tpu.matmul %42, %43, %cst_33 {dimension_numbers = #tpu.dot_dimension_numbers<[1], [0], [0], [1], [0, 0, 1, 1], [], []>} : vector<8x8xf32>, vector<8x32xf32>, vector<8x32xf32> -> vector<8x32xf32>
    %c0_34 = arith.constant 0 : index
    %c0_35 = arith.constant 0 : index
    %45 = vector.load %arg14[%c0_34, %c0_35] : memref<1x32xf32, #tpu.memory_space<vmem>>, vector<1x32xf32>
    %46 = vector.broadcast %1 : vector<8x1xf32> to vector<8x32xf32>
    %47 = vector.broadcast %45 : vector<1x32xf32> to vector<8x32xf32>
    %48 = arith.mulf %46, %47 : vector<8x32xf32>
    %49 = arith.addf %44, %48 : vector<8x32xf32>
    %c0_36 = arith.constant 0 : index
    %c0_37 = arith.constant 0 : index
    %50 = vector.load %arg15[%c0_36, %c0_37] : memref<1x32xf32, #tpu.memory_space<vmem>>, vector<1x32xf32>
    %51 = vector.broadcast %50 : vector<1x32xf32> to vector<8x32xf32>
    %52 = arith.addf %49, %51 : vector<8x32xf32>
    %cst_38 = arith.constant 0.000000e+00 : f32
    %53 = vector.broadcast %cst_38 : f32 to vector<8x32xf32>
    %54 = arith.cmpf oge, %52, %53 : vector<8x32xf32>
    %cst_39 = arith.constant 0.00999999977 : f32
    %55 = vector.broadcast %cst_39 : f32 to vector<8x32xf32>
    %56 = arith.mulf %55, %52 : vector<8x32xf32>
    %57 = arith.select %54, %52, %56 : vector<8x32xi1>, vector<8x32xf32>
    %c0_40 = arith.constant 0 : index
    %c0_41 = arith.constant 0 : index
    %58 = vector.load %arg16[%c0_40, %c0_41] : memref<32x64xf32, #tpu.memory_space<vmem>>, vector<32x64xf32>
    %cst_42 = arith.constant dense<0.000000e+00> : vector<8x64xf32>
    %59 = tpu.matmul %57, %58, %cst_42 {dimension_numbers = #tpu.dot_dimension_numbers<[1], [0], [0], [1], [0, 0, 1, 1], [], []>} : vector<8x32xf32>, vector<32x64xf32>, vector<8x64xf32> -> vector<8x64xf32>
    %c0_43 = arith.constant 0 : index
    %c0_44 = arith.constant 0 : index
    %60 = vector.load %arg17[%c0_43, %c0_44] : memref<1x64xf32, #tpu.memory_space<vmem>>, vector<1x64xf32>
    %61 = vector.broadcast %60 : vector<1x64xf32> to vector<8x64xf32>
    %62 = arith.addf %59, %61 : vector<8x64xf32>
    %cst_45 = arith.constant 0.000000e+00 : f32
    %63 = vector.broadcast %cst_45 : f32 to vector<8x64xf32>
    %64 = arith.cmpf oge, %62, %63 : vector<8x64xf32>
    %cst_46 = arith.constant 0.00999999977 : f32
    %65 = vector.broadcast %cst_46 : f32 to vector<8x64xf32>
    %66 = arith.mulf %65, %62 : vector<8x64xf32>
    %67 = arith.select %64, %62, %66 : vector<8x64xi1>, vector<8x64xf32>
    %c0_47 = arith.constant 0 : index
    %c0_48 = arith.constant 0 : index
    %68 = vector.load %arg18[%c0_47, %c0_48] : memref<64x32xf32, #tpu.memory_space<vmem>>, vector<64x32xf32>
    %cst_49 = arith.constant dense<0.000000e+00> : vector<8x32xf32>
    %69 = tpu.matmul %67, %68, %cst_49 {dimension_numbers = #tpu.dot_dimension_numbers<[1], [0], [0], [1], [0, 0, 1, 1], [], []>} : vector<8x64xf32>, vector<64x32xf32>, vector<8x32xf32> -> vector<8x32xf32>
    %c0_50 = arith.constant 0 : index
    %c0_51 = arith.constant 0 : index
    %70 = vector.load %arg19[%c0_50, %c0_51] : memref<1x32xf32, #tpu.memory_space<vmem>>, vector<1x32xf32>
    %71 = vector.broadcast %70 : vector<1x32xf32> to vector<8x32xf32>
    %72 = arith.addf %69, %71 : vector<8x32xf32>
    %73 = arith.negf %72 : vector<8x32xf32>
    %74 = math.exp %73 : vector<8x32xf32>
    %cst_52 = arith.constant 1.000000e+00 : f32
    %75 = vector.broadcast %cst_52 : f32 to vector<8x32xf32>
    %76 = arith.addf %75, %74 : vector<8x32xf32>
    %77 = arith.divf %75, %76 : vector<8x32xf32>
    %c0_53 = arith.constant 0 : index
    %c0_54 = arith.constant 0 : index
    %78 = vector.load %arg20[%c0_53, %c0_54] : memref<8x32xf32, #tpu.memory_space<vmem>>, vector<8x32xf32>
    tpu.vector_store %arg20[%c0_53, %c0_54], %77 {strides = array<i32>} : memref<8x32xf32, #tpu.memory_space<vmem>>, vector<8x32xf32>,
    %c0_55 = arith.constant 0 : index
    %c0_56 = arith.constant 0 : index
    %79 = vector.load %arg21[%c0_55, %c0_56] : memref<8x16xf32, #tpu.memory_space<vmem>>, vector<8x8xf32>
    tpu.vector_store %arg21[%c0_55, %c0_56], %32 {strides = array<i32>} : memref<8x16xf32, #tpu.memory_space<vmem>>, vector<8x8xf32>,
    %c0_57 = arith.constant 0 : index
    %c8 = arith.constant 8 : index
    %80 = vector.load %arg21[%c0_57, %c8] : memref<8x16xf32, #tpu.memory_space<vmem>>, vector<8x8xf32>
    tpu.vector_store %arg21[%c0_57, %c8], %37 {strides = array<i32>} : memref<8x16xf32, #tpu.memory_space<vmem>>, vector<8x8xf32>,
    return
  }
  func.func @transform_0(%arg0: i32) -> (i32, i32) {
    %c0_i32 = arith.constant 0 : i32
    %c0_i32_0 = arith.constant 0 : i32
    return %arg0, %c0_i32 : i32, i32
  }
  func.func @transform_1(%arg0: i32) -> (i32, i32) {
    %c0_i32 = arith.constant 0 : i32
    %c0_i32_0 = arith.constant 0 : i32
    return %arg0, %c0_i32 : i32, i32
  }
  func.func @transform_2(%arg0: i32) -> (i32, i32) {
    %c0_i32 = arith.constant 0 : i32
    %c0_i32_0 = arith.constant 0 : i32
    return %arg0, %c0_i32 : i32, i32
  }
  func.func @transform_3(%arg0: i32) -> (i32, i32) {
    %c0_i32 = arith.constant 0 : i32
    %c0_i32_0 = arith.constant 0 : i32
    %c0_i32_1 = arith.constant 0 : i32
    return %c0_i32, %c0_i32_0 : i32, i32
  }
  func.func @transform_4(%arg0: i32) -> (i32, i32) {
    %c0_i32 = arith.constant 0 : i32
    %c0_i32_0 = arith.constant 0 : i32
    %c0_i32_1 = arith.constant 0 : i32
    return %c0_i32, %c0_i32_0 : i32, i32
  }
  func.func @transform_5(%arg0: i32) -> (i32, i32) {
    %c0_i32 = arith.constant 0 : i32
    %c0_i32_0 = arith.constant 0 : i32
    %c0_i32_1 = arith.constant 0 : i32
    return %c0_i32, %c0_i32_0 : i32, i32
  }
  func.func @transform_6(%arg0: i32) -> (i32, i32) {
    %c0_i32 = arith.constant 0 : i32
    %c0_i32_0 = arith.constant 0 : i32
    %c0_i32_1 = arith.constant 0 : i32
    return %c0_i32, %c0_i32_0 : i32, i32
  }
  func.func @transform_7(%arg0: i32) -> (i32, i32) {
    %c0_i32 = arith.constant 0 : i32
    %c0_i32_0 = arith.constant 0 : i32
    %c0_i32_1 = arith.constant 0 : i32
    return %c0_i32, %c0_i32_0 : i32, i32
  }
  func.func @transform_8(%arg0: i32) -> (i32, i32) {
    %c0_i32 = arith.constant 0 : i32
    %c0_i32_0 = arith.constant 0 : i32
    %c0_i32_1 = arith.constant 0 : i32
    return %c0_i32, %c0_i32_0 : i32, i32
  }
  func.func @transform_9(%arg0: i32) -> (i32, i32) {
    %c0_i32 = arith.constant 0 : i32
    %c0_i32_0 = arith.constant 0 : i32
    %c0_i32_1 = arith.constant 0 : i32
    return %c0_i32, %c0_i32_0 : i32, i32
  }
  func.func @transform_10(%arg0: i32) -> (i32, i32) {
    %c0_i32 = arith.constant 0 : i32
    %c0_i32_0 = arith.constant 0 : i32
    %c0_i32_1 = arith.constant 0 : i32
    return %c0_i32, %c0_i32_0 : i32, i32
  }
  func.func @transform_11(%arg0: i32) -> (i32, i32) {
    %c0_i32 = arith.constant 0 : i32
    %c0_i32_0 = arith.constant 0 : i32
    %c0_i32_1 = arith.constant 0 : i32
    return %c0_i32, %c0_i32_0 : i32, i32
  }
  func.func @transform_12(%arg0: i32) -> (i32, i32) {
    %c0_i32 = arith.constant 0 : i32
    %c0_i32_0 = arith.constant 0 : i32
    %c0_i32_1 = arith.constant 0 : i32
    return %c0_i32, %c0_i32_0 : i32, i32
  }
  func.func @transform_13(%arg0: i32) -> (i32, i32) {
    %c0_i32 = arith.constant 0 : i32
    %c0_i32_0 = arith.constant 0 : i32
    %c0_i32_1 = arith.constant 0 : i32
    return %c0_i32, %c0_i32_0 : i32, i32
  }
  func.func @transform_14(%arg0: i32) -> (i32, i32) {
    %c0_i32 = arith.constant 0 : i32
    %c0_i32_0 = arith.constant 0 : i32
    %c0_i32_1 = arith.constant 0 : i32
    return %c0_i32, %c0_i32_0 : i32, i32
  }
  func.func @transform_15(%arg0: i32) -> (i32, i32) {
    %c0_i32 = arith.constant 0 : i32
    %c0_i32_0 = arith.constant 0 : i32
    %c0_i32_1 = arith.constant 0 : i32
    return %c0_i32, %c0_i32_0 : i32, i32
  }
  func.func @transform_16(%arg0: i32) -> (i32, i32) {
    %c0_i32 = arith.constant 0 : i32
    %c0_i32_0 = arith.constant 0 : i32
    %c0_i32_1 = arith.constant 0 : i32
    return %c0_i32, %c0_i32_0 : i32, i32
  }
  func.func @transform_17(%arg0: i32) -> (i32, i32) {
    %c0_i32 = arith.constant 0 : i32
    %c0_i32_0 = arith.constant 0 : i32
    %c0_i32_1 = arith.constant 0 : i32
    return %c0_i32, %c0_i32_0 : i32, i32
  }
  func.func @transform_18(%arg0: i32) -> (i32, i32) {
    %c0_i32 = arith.constant 0 : i32
    %c0_i32_0 = arith.constant 0 : i32
    %c0_i32_1 = arith.constant 0 : i32
    return %c0_i32, %c0_i32_0 : i32, i32
  }
  func.func @transform_19(%arg0: i32) -> (i32, i32) {
    %c0_i32 = arith.constant 0 : i32
    %c0_i32_0 = arith.constant 0 : i32
    return %arg0, %c0_i32 : i32, i32
  }
  func.func @transform_20(%arg0: i32) -> (i32, i32) {
    %c0_i32 = arith.constant 0 : i32
    %c0_i32_0 = arith.constant 0 : i32
    return %arg0, %c0_i32 : i32, i32
  }
}

</mosaic_0001>

<llo_original>
// kernel: cvae_forward.1
$region0: #{cvae_forward.1}
  #allocation0 [shape = 'u32[]', space=smem, size = 0x4, offset = 0x4, fixed_abs, tag = 'smem constant byte address 0x4 - core index']
  #allocation1 [shape = 'u32[144,128]{1,0:T(1,128)}', space=vmem, size = 0x12000, scoped, tag = 'internal scratch']
  %s0 = inlined_call_operand.vmem [shape: f32[8,32], index: 0, kind: input, shape index: {}]
  %s1 = inlined_call_operand.vmem [shape: f32[8,1], index: 1, kind: input, shape index: {}]
  %s2 = inlined_call_operand.vmem [shape: f32[8,8], index: 2, kind: input, shape index: {}]
  %s3 = inlined_call_operand.vmem [shape: f32[32,64], index: 3, kind: input, shape index: {}]
  %s4 = inlined_call_operand.vmem [shape: f32[1,64], index: 4, kind: input, shape index: {}]
  %s5 = inlined_call_operand.vmem [shape: f32[1,64], index: 5, kind: input, shape index: {}]
  %s6 = inlined_call_operand.vmem [shape: f32[64,32], index: 6, kind: input, shape index: {}]
  %s7 = inlined_call_operand.vmem [shape: f32[1,32], index: 7, kind: input, shape index: {}]
  %s8 = inlined_call_operand.vmem [shape: f32[32,8], index: 8, kind: input, shape index: {}]
  %s9 = inlined_call_operand.vmem [shape: f32[1,8], index: 9, kind: input, shape index: {}]
  %s10 = inlined_call_operand.vmem [shape: f32[32,8], index: 10, kind: input, shape index: {}]
  %s11 = inlined_call_operand.vmem [shape: f32[1,8], index: 11, kind: input, shape index: {}]
  %s12 = inlined_call_operand.vmem [shape: f32[8,32], index: 12, kind: input, shape index: {}]
  %s13 = inlined_call_operand.vmem [shape: f32[1,32], index: 13, kind: input, shape index: {}]
  %s14 = inlined_call_operand.vmem [shape: f32[1,32], index: 14, kind: input, shape index: {}]
  %s15 = inlined_call_operand.vmem [shape: f32[32,64], index: 15, kind: input, shape index: {}]
  %s16 = inlined_call_operand.vmem [shape: f32[1,64], index: 16, kind: input, shape index: {}]
  %s17 = inlined_call_operand.vmem [shape: f32[64,32], index: 17, kind: input, shape index: {}]
  %s18 = inlined_call_operand.vmem [shape: f32[1,32], index: 18, kind: input, shape index: {}]
  %s19 = inlined_call_operand.hbm [shape: f32[8,32], index: 19, kind: output, shape index: {0}]
  %s20 = inlined_call_operand.vmem [shape: f32[8,16], index: 20, kind: output, shape index: {1}]
  %21 = xla_tuple %s19, %s20
  %s22 = sld [smem:[#allocation0]]
  $region94: #{cvae_forward.1} parent=0
    _
  %s24 = ssub.s32 1, %s22
  %s25 = scalar_select 0, %s24, %s22
  $region1: #{cvae_forward.1} parent=0
    #allocation2 [shape = 'u8[4096]{0}', space=vmem, size = 0x1000, scoped, tag = 'output window, operand 0, single buffered']
    #allocation3 [shape = 's32[1]{0}', space=sflag, size = 0x4, scoped, tag = 'scoped memory for cvae_forward.1']
    %26 = vsyncpa [#allocation3], 0
    // Predicated region
    $region2: #{cvae_forward.1} parent=1 // pred_check
      _
    $region3: #{cvae_forward.1} parent=1 // pred_check_branch
      %28 = sbr.rel (0) target = $region5
    $region4: #{cvae_forward.1} parent=1 // pred_region
      _
    $region5: #{cvae_forward.1} parent=1 // pred_fallthru
      _
    // Predicated region
    $region6: #{cvae_forward.1} parent=1 // pred_check
      _
    $region7: #{cvae_forward.1} parent=1 // pred_check_branch
      %30 = sbr.rel (0) target = $region9
    $region8: #{cvae_forward.1} parent=1 // pred_region
      _
    $region9: #{cvae_forward.1} parent=1 // pred_fallthru
      _
    // Predicated region
    $region10: #{cvae_forward.1} parent=1 // pred_check
      _
    $region11: #{cvae_forward.1} parent=1 // pred_check_branch
      %32 = sbr.rel (0) target = $region13
    $region12: #{cvae_forward.1} parent=1 // pred_region
      _
    $region13: #{cvae_forward.1} parent=1 // pred_fallthru
      _
    // Predicated region
    $region14: #{cvae_forward.1} parent=1 // pred_check
      _
    $region15: #{cvae_forward.1} parent=1 // pred_check_branch
      %34 = sbr.rel (0) target = $region17
    $region16: #{cvae_forward.1} parent=1 // pred_region
      _
    $region17: #{cvae_forward.1} parent=1 // pred_fallthru
      _
    // Predicated region
    $region18: #{cvae_forward.1} parent=1 // pred_check
      _
    $region19: #{cvae_forward.1} parent=1 // pred_check_branch
      %36 = sbr.rel (0) target = $region21
    $region20: #{cvae_forward.1} parent=1 // pred_region
      _
    $region21: #{cvae_forward.1} parent=1 // pred_fallthru
      _
    // Predicated region
    $region22: #{cvae_forward.1} parent=1 // pred_check
      _
    $region23: #{cvae_forward.1} parent=1 // pred_check_branch
      %38 = sbr.rel (0) target = $region25
    $region24: #{cvae_forward.1} parent=1 // pred_region
      _
    $region25: #{cvae_forward.1} parent=1 // pred_fallthru
      _
    // Predicated region
    $region26: #{cvae_forward.1} parent=1 // pred_check
      _
    $region27: #{cvae_forward.1} parent=1 // pred_check_branch
      %40 = sbr.rel (0) target = $region29
    $region28: #{cvae_forward.1} parent=1 // pred_region
      _
    $region29: #{cvae_forward.1} parent=1 // pred_fallthru
      _
    // Predicated region
    $region30: #{cvae_forward.1} parent=1 // pred_check
      _
    $region31: #{cvae_forward.1} parent=1 // pred_check_branch
      %42 = sbr.rel (0) target = $region33
    $region32: #{cvae_forward.1} parent=1 // pred_region
      _
    $region33: #{cvae_forward.1} parent=1 // pred_fallthru
      _
    // Predicated region
    $region34: #{cvae_forward.1} parent=1 // pred_check
      _
    $region35: #{cvae_forward.1} parent=1 // pred_check_branch
      %44 = sbr.rel (0) target = $region37
    $region36: #{cvae_forward.1} parent=1 // pred_region
      _
    $region37: #{cvae_forward.1} parent=1 // pred_fallthru
      _
    // Predicated region
    $region38: #{cvae_forward.1} parent=1 // pred_check
      _
    $region39: #{cvae_forward.1} parent=1 // pred_check_branch
      %46 = sbr.rel (0) target = $region41
    $region40: #{cvae_forward.1} parent=1 // pred_region
      _
    $region41: #{cvae_forward.1} parent=1 // pred_fallthru
      _
    // Predicated region
    $region42: #{cvae_forward.1} parent=1 // pred_check
      _
    $region43: #{cvae_forward.1} parent=1 // pred_check_branch
      %48 = sbr.rel (0) target = $region45
    $region44: #{cvae_forward.1} parent=1 // pred_region
      _
    $region45: #{cvae_forward.1} parent=1 // pred_fallthru
      _
    // Predicated region
    $region46: #{cvae_forward.1} parent=1 // pred_check
      _
    $region47: #{cvae_forward.1} parent=1 // pred_check_branch
      %50 = sbr.rel (0) target = $region49
    $region48: #{cvae_forward.1} parent=1 // pred_region
      _
    $region49: #{cvae_forward.1} parent=1 // pred_fallthru
      _
    // Predicated region
    $region50: #{cvae_forward.1} parent=1 // pred_check
      _
    $region51: #{cvae_forward.1} parent=1 // pred_check_branch
      %52 = sbr.rel (0) target = $region53
    $region52: #{cvae_forward.1} parent=1 // pred_region
      _
    $region53: #{cvae_forward.1} parent=1 // pred_fallthru
      _
    // Predicated region
    $region54: #{cvae_forward.1} parent=1 // pred_check
      _
    $region55: #{cvae_forward.1} parent=1 // pred_check_branch
      %54 = sbr.rel (0) target = $region57
    $region56: #{cvae_forward.1} parent=1 // pred_region
      _
    $region57: #{cvae_forward.1} parent=1 // pred_fallthru
      _
    // Predicated region
    $region58: #{cvae_forward.1} parent=1 // pred_check
      _
    $region59: #{cvae_forward.1} parent=1 // pred_check_branch
      %56 = sbr.rel (0) target = $region61
    $region60: #{cvae_forward.1} parent=1 // pred_region
      _
    $region61: #{cvae_forward.1} parent=1 // pred_fallthru
      _
    // Predicated region
    $region62: #{cvae_forward.1} parent=1 // pred_check
      _
    $region63: #{cvae_forward.1} parent=1 // pred_check_branch
      %58 = sbr.rel (0) target = $region65
    $region64: #{cvae_forward.1} parent=1 // pred_region
      _
    $region65: #{cvae_forward.1} parent=1 // pred_fallthru
      _
    // Predicated region
    $region66: #{cvae_forward.1} parent=1 // pred_check
      _
    $region67: #{cvae_forward.1} parent=1 // pred_check_branch
      %60 = sbr.rel (0) target = $region69
    $region68: #{cvae_forward.1} parent=1 // pred_region
      _
    $region69: #{cvae_forward.1} parent=1 // pred_fallthru
      _
    // Predicated region
    $region70: #{cvae_forward.1} parent=1 // pred_check
      _
    $region71: #{cvae_forward.1} parent=1 // pred_check_branch
      %62 = sbr.rel (0) target = $region73
    $region72: #{cvae_forward.1} parent=1 // pred_region
      _
    $region73: #{cvae_forward.1} parent=1 // pred_fallthru
      _
    // Predicated region
    $region74: #{cvae_forward.1} parent=1 // pred_check
      _
    $region75: #{cvae_forward.1} parent=1 // pred_check_branch
      %64 = sbr.rel (0) target = $region77
    $region76: #{cvae_forward.1} parent=1 // pred_region
      _
    $region77: #{cvae_forward.1} parent=1 // pred_fallthru
      _
    %v65 = vld [vmem:[%s0] sm:$0xff]
    %v66 = vld [vmem:[%s1] sm:$0xff]
    %v67 = vld [vmem:[%s2] sm:$0xff]
    %v68 = vld [vmem:[%s3] sm:$0xff]
    %v69 = vld [vmem:[%s3 + $0x8] sm:$0xff]
    %v70 = vld [vmem:[%s3 + $0x10] sm:$0xff]
    %v71 = vld [vmem:[%s3 + $0x18] sm:$0xff]
    %v72 = vld [vmem:[%s4] sm:$0x1]
    %74 = vset.pattern.permute.xlu0 0
    %75 = vperm.xlu0 %74, %v66
    %v76 = vpop.permute.xlu0 %75
    %v79 = vlaneseq
    %v80 = vshrl.u32 %v79, 7
    %v81 = vsub.s32 0, %v80
    %v82 = vrot.slane %v72, %v81
    %v84 = vmul.f32 %v76, %v82
    %vm85 = vcmask 261120
    %v87 = vsel %vm85, %v65, 0
    %89 = vmatprep.subr.mxu0 0.0
    %90 = vmatpush1.msra.mxu0 0.0
    %91 = vmatprep.subr.mxu0 0.0
    %92 = vmatpush1.msra.mxu0 0.0
    %93 = vmatprep.subr.mxu0 0.0
    %94 = vmatpush1.msra.mxu0 0.0
    %95 = vmatprep.subr.mxu0 0.0
    %96 = vmatpush1.msra.mxu0 0.0
    %97 = vmatprep.subr.mxu0 0.0
    %98 = vmatpush1.msra.mxu0 0.0
    %99 = vmatprep.subr.mxu0 0.0
    %100 = vmatpush1.msra.mxu0 0.0
    %101 = vmatprep.subr.mxu0 0.0
    %102 = vmatpush1.msra.mxu0 0.0
    %103 = vmatprep.subr.mxu0 0.0
    %104 = vmatpush1.msra.mxu0 0.0
    %105 = vmatprep.subr.mxu0 0.0
    %106 = vmatpush1.msra.mxu0 0.0
    %107 = vmatprep.subr.mxu0 0.0
    %108 = vmatpush1.msra.mxu0 0.0
    %109 = vmatprep.subr.mxu0 0.0
    %110 = vmatpush1.msra.mxu0 0.0
    %111 = vmatprep.subr.mxu0 0.0
    %112 = vmatpush1.msra.mxu0 0.0
    %113 = vmatprep.subr.mxu0 0.0
    %114 = vmatpush1.msra.mxu0 %v71
    %115 = vmatprep.subr.mxu0 0.0
    %116 = vmatpush1.msra.mxu0 %v70
    %117 = vmatprep.subr.mxu0 0.0
    %118 = vmatpush1.msra.mxu0 %v69
    %119 = vmatprep.subr.mxu0 0.0
    %120 = vmatpush1.msra.mxu0 %v68
    %121 = vmatprep.subr.mxu0 0.0
    %122 = vmatpush2.msra.mxu0 0.0
    %123 = vmatprep.subr.mxu0 0.0
    %124 = vmatpush2.msra.mxu0 0.0
    %125 = vmatprep.subr.mxu0 0.0
    %126 = vmatpush2.msra.mxu0 0.0
    %127 = vmatprep.subr.mxu0 0.0
    %128 = vmatpush2.msra.mxu0 0.0
    %129 = vmatprep.subr.mxu0 0.0
    %130 = vmatpush2.msra.mxu0 0.0
    %131 = vmatprep.subr.mxu0 0.0
    %132 = vmatpush2.msra.mxu0 0.0
    %133 = vmatprep.subr.mxu0 0.0
    %134 = vmatpush2.msra.mxu0 0.0
    %135 = vmatprep.subr.mxu0 0.0
    %136 = vmatpush2.msra.mxu0 0.0
    %137 = vmatprep.subr.mxu0 0.0
    %138 = vmatpush2.msra.mxu0 0.0
    %139 = vmatprep.subr.mxu0 0.0
    %140 = vmatpush2.msra.mxu0 0.0
    %141 = vmatprep.subr.mxu0 0.0
    %142 = vmatpush2.msra.mxu0 0.0
    %143 = vmatprep.subr.mxu0 0.0
    %144 = vmatpush2.msra.mxu0 0.0
    %145 = vmatprep.subr.mxu0 0.0
    %146 = vmatpush2.msra.mxu0 0.0
    %147 = vmatprep.subr.mxu0 0.0
    %148 = vmatpush2.msra.mxu0 0.0
    %149 = vmatprep.subr.mxu0 0.0
    %150 = vmatpush2.msra.mxu0 0.0
    %151 = vmatprep.subr.mxu0 0.0
    %152 = vmatpush2.msra.mxu0 0.0
    %153 = vmatprep.mubr.f32.mxu0 0.0
    %154 = vmatmul.mubr.f32.gmra.mxu0 %v87
    %v155 = vpop.f32.mrf.mxu0
    %v156 = vadd.f32 %v84, %v155
    %v157 = vpop.f32.mrf.mxu0
    %158 = vdwg.mxu0
    %v159 = vld [vmem:[%s5] sm:$0x1]
    %v161 = vlaneseq
    %v162 = vshrl.u32 %v161, 7
    %v163 = vsub.s32 0, %v162
    %v164 = vrot.slane %v159, %v163
    %v166 = vadd.f32 %v156, %v164
    %vm167 = vcmp.ge.f32.partialorder %v166, 0.0
    %v168 = vmul.f32 %v166, 0.01
    %v169 = vsel %vm167, %v166, %v168
    %v170 = vld [vmem:[%s6] sm:$0xff]
    %v171 = vld [vmem:[%s6 + $0x8] sm:$0xff]
    %v172 = vld [vmem:[%s6 + $0x10] sm:$0xff]
    %v173 = vld [vmem:[%s6 + $0x18] sm:$0xff]
    %v174 = vld [vmem:[%s6 + $0x20] sm:$0xff]
    %v175 = vld [vmem:[%s6 + $0x28] sm:$0xff]
    %v176 = vld [vmem:[%s6 + $0x30] sm:$0xff]
    %v177 = vld [vmem:[%s6 + $0x38] sm:$0xff]
    %v178 = vld [vmem:[%s7] sm:$0x1]
    %v180 = vlaneseq
    %v181 = vshrl.u32 %v180, 7
    %v182 = vsub.s32 0, %v181
    %v183 = vrot.slane %v178, %v182
    %vm185 = vcmask 523264
    %v187 = vsel %vm185, %v169, 0
    %189 = vmatprep.subr.mxu0 0.0
    %190 = vmatpush1.msra.mxu0 0.0
    %191 = vmatprep.subr.mxu0 0.0
    %192 = vmatpush1.msra.mxu0 0.0
    %193 = vmatprep.subr.mxu0 0.0
    %194 = vmatpush1.msra.mxu0 0.0
    %195 = vmatprep.subr.mxu0 0.0
    %196 = vmatpush1.msra.mxu0 0.0
    %197 = vmatprep.subr.mxu0 0.0
    %198 = vmatpush1.msra.mxu0 0.0
    %199 = vmatprep.subr.mxu0 0.0
    %200 = vmatpush1.msra.mxu0 0.0
    %201 = vmatprep.subr.mxu0 0.0
    %202 = vmatpush1.msra.mxu0 0.0
    %203 = vmatprep.subr.mxu0 0.0
    %204 = vmatpush1.msra.mxu0 0.0
    %205 = vmatprep.subr.mxu0 0.0
    %206 = vmatpush1.msra.mxu0 %v177
    %207 = vmatprep.subr.mxu0 0.0
    %208 = vmatpush1.msra.mxu0 %v176
    %209 = vmatprep.subr.mxu0 0.0
    %210 = vmatpush1.msra.mxu0 %v175
    %211 = vmatprep.subr.mxu0 0.0
    %212 = vmatpush1.msra.mxu0 %v174
    %213 = vmatprep.subr.mxu0 0.0
    %214 = vmatpush1.msra.mxu0 %v173
    %215 = vmatprep.subr.mxu0 0.0
    %216 = vmatpush1.msra.mxu0 %v172
    %217 = vmatprep.subr.mxu0 0.0
    %218 = vmatpush1.msra.mxu0 %v171
    %219 = vmatprep.subr.mxu0 0.0
    %220 = vmatpush1.msra.mxu0 %v170
    %221 = vmatprep.subr.mxu0 0.0
    %222 = vmatpush2.msra.mxu0 0.0
    %223 = vmatprep.subr.mxu0 0.0
    %224 = vmatpush2.msra.mxu0 0.0
    %225 = vmatprep.subr.mxu0 0.0
    %226 = vmatpush2.msra.mxu0 0.0
    %227 = vmatprep.subr.mxu0 0.0
    %228 = vmatpush2.msra.mxu0 0.0
    %229 = vmatprep.subr.mxu0 0.0
    %230 = vmatpush2.msra.mxu0 0.0
    %231 = vmatprep.subr.mxu0 0.0
    %232 = vmatpush2.msra.mxu0 0.0
    %233 = vmatprep.subr.mxu0 0.0
    %234 = vmatpush2.msra.mxu0 0.0
    %235 = vmatprep.subr.mxu0 0.0
    %236 = vmatpush2.msra.mxu0 0.0
    %237 = vmatprep.subr.mxu0 0.0
    %238 = vmatpush2.msra.mxu0 0.0
    %239 = vmatprep.subr.mxu0 0.0
    %240 = vmatpush2.msra.mxu0 0.0
    %241 = vmatprep.subr.mxu0 0.0
    %242 = vmatpush2.msra.mxu0 0.0
    %243 = vmatprep.subr.mxu0 0.0
    %244 = vmatpush2.msra.mxu0 0.0
    %245 = vmatprep.subr.mxu0 0.0
    %246 = vmatpush2.msra.mxu0 0.0
    %247 = vmatprep.subr.mxu0 0.0
    %248 = vmatpush2.msra.mxu0 0.0
    %249 = vmatprep.subr.mxu0 0.0
    %250 = vmatpush2.msra.mxu0 0.0
    %251 = vmatprep.subr.mxu0 0.0
    %252 = vmatpush2.msra.mxu0 0.0
    %253 = vmatprep.mubr.f32.mxu0 0.0
    %254 = vmatmul.mubr.f32.gmra.mxu0 %v187
    %v255 = vpop.f32.mrf.mxu0
    %v256 = vadd.f32 %v183, %v255
    %v257 = vpop.f32.mrf.mxu0
    %258 = vdwg.mxu0
    %vm259 = vcmp.ge.f32.partialorder %v256, 0.0
    %v260 = vmul.f32 %v256, 0.01
    %v261 = vsel %vm259, %v256, %v260
    %v262 = vld [vmem:[%s8] sm:$0xff]
    %v263 = vld [vmem:[%s8 + $0x8] sm:$0xff]
    %v264 = vld [vmem:[%s8 + $0x10] sm:$0xff]
    %v265 = vld [vmem:[%s8 + $0x18] sm:$0xff]
    %v266 = vld [vmem:[%s9] sm:$0x1]
    %v268 = vlaneseq
    %v269 = vshrl.u32 %v268, 7
    %v270 = vsub.s32 0, %v269
    %v271 = vrot.slane %v266, %v270
    %v274 = vsel %vm85, %v261, 0
    %276 = vmatprep.subr.mxu0 0.0
    %277 = vmatpush1.msra.mxu0 0.0
    %278 = vmatprep.subr.mxu0 0.0
    %279 = vmatpush1.msra.mxu0 0.0
    %280 = vmatprep.subr.mxu0 0.0
    %281 = vmatpush1.msra.mxu0 0.0
    %282 = vmatprep.subr.mxu0 0.0
    %283 = vmatpush1.msra.mxu0 0.0
    %284 = vmatprep.subr.mxu0 0.0
    %285 = vmatpush1.msra.mxu0 0.0
    %286 = vmatprep.subr.mxu0 0.0
    %287 = vmatpush1.msra.mxu0 0.0
    %288 = vmatprep.subr.mxu0 0.0
    %289 = vmatpush1.msra.mxu0 0.0
    %290 = vmatprep.subr.mxu0 0.0
    %291 = vmatpush1.msra.mxu0 0.0
    %292 = vmatprep.subr.mxu0 0.0
    %293 = vmatpush1.msra.mxu0 0.0
    %294 = vmatprep.subr.mxu0 0.0
    %295 = vmatpush1.msra.mxu0 0.0
    %296 = vmatprep.subr.mxu0 0.0
    %297 = vmatpush1.msra.mxu0 0.0
    %298 = vmatprep.subr.mxu0 0.0
    %299 = vmatpush1.msra.mxu0 0.0
    %300 = vmatprep.subr.mxu0 0.0
    %301 = vmatpush1.msra.mxu0 %v265
    %302 = vmatprep.subr.mxu0 0.0
    %303 = vmatpush1.msra.mxu0 %v264
    %304 = vmatprep.subr.mxu0 0.0
    %305 = vmatpush1.msra.mxu0 %v263
    %306 = vmatprep.subr.mxu0 0.0
    %307 = vmatpush1.msra.mxu0 %v262
    %308 = vmatprep.subr.mxu0 0.0
    %309 = vmatpush2.msra.mxu0 0.0
    %310 = vmatprep.subr.mxu0 0.0
    %311 = vmatpush2.msra.mxu0 0.0
    %312 = vmatprep.subr.mxu0 0.0
    %313 = vmatpush2.msra.mxu0 0.0
    %314 = vmatprep.subr.mxu0 0.0
    %315 = vmatpush2.msra.mxu0 0.0
    %316 = vmatprep.subr.mxu0 0.0
    %317 = vmatpush2.msra.mxu0 0.0
    %318 = vmatprep.subr.mxu0 0.0
    %319 = vmatpush2.msra.mxu0 0.0
    %320 = vmatprep.subr.mxu0 0.0
    %321 = vmatpush2.msra.mxu0 0.0
    %322 = vmatprep.subr.mxu0 0.0
    %323 = vmatpush2.msra.mxu0 0.0
    %324 = vmatprep.subr.mxu0 0.0
    %325 = vmatpush2.msra.mxu0 0.0
    %326 = vmatprep.subr.mxu0 0.0
    %327 = vmatpush2.msra.mxu0 0.0
    %328 = vmatprep.subr.mxu0 0.0
    %329 = vmatpush2.msra.mxu0 0.0
    %330 = vmatprep.subr.mxu0 0.0
    %331 = vmatpush2.msra.mxu0 0.0
    %332 = vmatprep.subr.mxu0 0.0
    %333 = vmatpush2.msra.mxu0 0.0
    %334 = vmatprep.subr.mxu0 0.0
    %335 = vmatpush2.msra.mxu0 0.0
    %336 = vmatprep.subr.mxu0 0.0
    %337 = vmatpush2.msra.mxu0 0.0
    %338 = vmatprep.subr.mxu0 0.0
    %339 = vmatpush2.msra.mxu0 0.0
    %340 = vmatprep.mubr.f32.mxu0 0.0
    %341 = vmatmul.mubr.f32.gmra.mxu0 %v274
    %v342 = vpop.f32.mrf.mxu0
    %v343 = vadd.f32 %v271, %v342
    %v344 = vpop.f32.mrf.mxu0
    %345 = vdwg.mxu0
    %v346 = vld [vmem:[%s10] sm:$0xff]
    %v347 = vld [vmem:[%s10 + $0x8] sm:$0xff]
    %v348 = vld [vmem:[%s10 + $0x10] sm:$0xff]
    %v349 = vld [vmem:[%s10 + $0x18] sm:$0xff]
    %v350 = vld [vmem:[%s11] sm:$0x1]
    %v352 = vlaneseq
    %v353 = vshrl.u32 %v352, 7
    %v354 = vsub.s32 0, %v353
    %v355 = vrot.slane %v350, %v354
    %357 = vmatprep.subr.mxu0 0.0
    %358 = vmatpush1.msra.mxu0 0.0
    %359 = vmatprep.subr.mxu0 0.0
    %360 = vmatpush1.msra.mxu0 0.0
    %361 = vmatprep.subr.mxu0 0.0
    %362 = vmatpush1.msra.mxu0 0.0
    %363 = vmatprep.subr.mxu0 0.0
    %364 = vmatpush1.msra.mxu0 0.0
    %365 = vmatprep.subr.mxu0 0.0
    %366 = vmatpush1.msra.mxu0 0.0
    %367 = vmatprep.subr.mxu0 0.0
    %368 = vmatpush1.msra.mxu0 0.0
    %369 = vmatprep.subr.mxu0 0.0
    %370 = vmatpush1.msra.mxu0 0.0
    %371 = vmatprep.subr.mxu0 0.0
    %372 = vmatpush1.msra.mxu0 0.0
    %373 = vmatprep.subr.mxu0 0.0
    %374 = vmatpush1.msra.mxu0 0.0
    %375 = vmatprep.subr.mxu0 0.0
    %376 = vmatpush1.msra.mxu0 0.0
    %377 = vmatprep.subr.mxu0 0.0
    %378 = vmatpush1.msra.mxu0 0.0
    %379 = vmatprep.subr.mxu0 0.0
    %380 = vmatpush1.msra.mxu0 0.0
    %381 = vmatprep.subr.mxu0 0.0
    %382 = vmatpush1.msra.mxu0 %v349
    %383 = vmatprep.subr.mxu0 0.0
    %384 = vmatpush1.msra.mxu0 %v348
    %385 = vmatprep.subr.mxu0 0.0
    %386 = vmatpush1.msra.mxu0 %v347
    %387 = vmatprep.subr.mxu0 0.0
    %388 = vmatpush1.msra.mxu0 %v346
    %389 = vmatprep.subr.mxu0 0.0
    %390 = vmatpush2.msra.mxu0 0.0
    %391 = vmatprep.subr.mxu0 0.0
    %392 = vmatpush2.msra.mxu0 0.0
    %393 = vmatprep.subr.mxu0 0.0
    %394 = vmatpush2.msra.mxu0 0.0
    %395 = vmatprep.subr.mxu0 0.0
    %396 = vmatpush2.msra.mxu0 0.0
    %397 = vmatprep.subr.mxu0 0.0
    %398 = vmatpush2.msra.mxu0 0.0
    %399 = vmatprep.subr.mxu0 0.0
    %400 = vmatpush2.msra.mxu0 0.0
    %401 = vmatprep.subr.mxu0 0.0
    %402 = vmatpush2.msra.mxu0 0.0
    %403 = vmatprep.subr.mxu0 0.0
    %404 = vmatpush2.msra.mxu0 0.0
    %405 = vmatprep.subr.mxu0 0.0
    %406 = vmatpush2.msra.mxu0 0.0
    %407 = vmatprep.subr.mxu0 0.0
    %408 = vmatpush2.msra.mxu0 0.0
    %409 = vmatprep.subr.mxu0 0.0
    %410 = vmatpush2.msra.mxu0 0.0
    %411 = vmatprep.subr.mxu0 0.0
    %412 = vmatpush2.msra.mxu0 0.0
    %413 = vmatprep.subr.mxu0 0.0
    %414 = vmatpush2.msra.mxu0 0.0
    %415 = vmatprep.subr.mxu0 0.0
    %416 = vmatpush2.msra.mxu0 0.0
    %417 = vmatprep.subr.mxu0 0.0
    %418 = vmatpush2.msra.mxu0 0.0
    %419 = vmatprep.subr.mxu0 0.0
    %420 = vmatpush2.msra.mxu0 0.0
    %421 = vmatprep.mubr.f32.mxu0 0.0
    %422 = vmatmul.mubr.f32.gmra.mxu0 %v274
    %v423 = vpop.f32.mrf.mxu0
    %v424 = vadd.f32 %v355, %v423
    %v425 = vpop.f32.mrf.mxu0
    %426 = vdwg.mxu0
    %v427 = vmul.f32 %v424, 0.5
    %v428 = vmul.f32 %v427, 1.442695
    %v429 = vpow.pop %v428
    %v430 = vmul.f32 %v67, %v429
    %v431 = vadd.f32 %v343, %v430
    %v432 = vld [vmem:[%s12] sm:$0xff]
    %v433 = vld [vmem:[%s13] sm:$0x1]
    %v435 = vlaneseq
    %v436 = vshrl.u32 %v435, 7
    %v437 = vsub.s32 0, %v436
    %v438 = vrot.slane %v433, %v437
    %v440 = vmul.f32 %v76, %v438
    %vm441 = vcmask 64512
    %v443 = vsel %vm441, %v431, 0
    %445 = vmatprep.subr.mxu0 0.0
    %446 = vmatpush1.msra.mxu0 0.0
    %447 = vmatprep.subr.mxu0 0.0
    %448 = vmatpush1.msra.mxu0 0.0
    %449 = vmatprep.subr.mxu0 0.0
    %450 = vmatpush1.msra.mxu0 0.0
    %451 = vmatprep.subr.mxu0 0.0
    %452 = vmatpush1.msra.mxu0 0.0
    %453 = vmatprep.subr.mxu0 0.0
    %454 = vmatpush1.msra.mxu0 0.0
    %455 = vmatprep.subr.mxu0 0.0
    %456 = vmatpush1.msra.mxu0 0.0
    %457 = vmatprep.subr.mxu0 0.0
    %458 = vmatpush1.msra.mxu0 0.0
    %459 = vmatprep.subr.mxu0 0.0
    %460 = vmatpush1.msra.mxu0 0.0
    %461 = vmatprep.subr.mxu0 0.0
    %462 = vmatpush1.msra.mxu0 0.0
    %463 = vmatprep.subr.mxu0 0.0
    %464 = vmatpush1.msra.mxu0 0.0
    %465 = vmatprep.subr.mxu0 0.0
    %466 = vmatpush1.msra.mxu0 0.0
    %467 = vmatprep.subr.mxu0 0.0
    %468 = vmatpush1.msra.mxu0 0.0
    %469 = vmatprep.subr.mxu0 0.0
    %470 = vmatpush1.msra.mxu0 0.0
    %471 = vmatprep.subr.mxu0 0.0
    %472 = vmatpush1.msra.mxu0 0.0
    %473 = vmatprep.subr.mxu0 0.0
    %474 = vmatpush1.msra.mxu0 0.0
    %475 = vmatprep.subr.mxu0 0.0
    %476 = vmatpush1.msra.mxu0 %v432
    %477 = vmatprep.subr.mxu0 0.0
    %478 = vmatpush2.msra.mxu0 0.0
    %479 = vmatprep.subr.mxu0 0.0
    %480 = vmatpush2.msra.mxu0 0.0
    %481 = vmatprep.subr.mxu0 0.0
    %482 = vmatpush2.msra.mxu0 0.0
    %483 = vmatprep.subr.mxu0 0.0
    %484 = vmatpush2.msra.mxu0 0.0
    %485 = vmatprep.subr.mxu0 0.0
    %486 = vmatpush2.msra.mxu0 0.0
    %487 = vmatprep.subr.mxu0 0.0
    %488 = vmatpush2.msra.mxu0 0.0
    %489 = vmatprep.subr.mxu0 0.0
    %490 = vmatpush2.msra.mxu0 0.0
    %491 = vmatprep.subr.mxu0 0.0
    %492 = vmatpush2.msra.mxu0 0.0
    %493 = vmatprep.subr.mxu0 0.0
    %494 = vmatpush2.msra.mxu0 0.0
    %495 = vmatprep.subr.mxu0 0.0
    %496 = vmatpush2.msra.mxu0 0.0
    %497 = vmatprep.subr.mxu0 0.0
    %498 = vmatpush2.msra.mxu0 0.0
    %499 = vmatprep.subr.mxu0 0.0
    %500 = vmatpush2.msra.mxu0 0.0
    %501 = vmatprep.subr.mxu0 0.0
    %502 = vmatpush2.msra.mxu0 0.0
    %503 = vmatprep.subr.mxu0 0.0
    %504 = vmatpush2.msra.mxu0 0.0
    %505 = vmatprep.subr.mxu0 0.0
    %506 = vmatpush2.msra.mxu0 0.0
    %507 = vmatprep.subr.mxu0 0.0
    %508 = vmatpush2.msra.mxu0 0.0
    %509 = vmatprep.mubr.f32.mxu0 0.0
    %510 = vmatmul.mubr.f32.gmra.mxu0 %v443
    %v511 = vpop.f32.mrf.mxu0
    %v512 = vadd.f32 %v440, %v511
    %v513 = vpop.f32.mrf.mxu0
    %514 = vdwg.mxu0
    %v515 = vld [vmem:[%s14] sm:$0x1]
    %v517 = vlaneseq
    %v518 = vshrl.u32 %v517, 7
    %v519 = vsub.s32 0, %v518
    %v520 = vrot.slane %v515, %v519
    %v522 = vadd.f32 %v512, %v520
    %vm523 = vcmp.ge.f32.partialorder %v522, 0.0
    %v524 = vmul.f32 %v522, 0.01
    %v525 = vsel %vm523, %v522, %v524
    %v526 = vld [vmem:[%s15] sm:$0xff]
    %v527 = vld [vmem:[%s15 + $0x8] sm:$0xff]
    %v528 = vld [vmem:[%s15 + $0x10] sm:$0xff]
    %v529 = vld [vmem:[%s15 + $0x18] sm:$0xff]
    %v530 = vld [vmem:[%s16] sm:$0x1]
    %v532 = vlaneseq
    %v533 = vshrl.u32 %v532, 7
    %v534 = vsub.s32 0, %v533
    %v535 = vrot.slane %v530, %v534
    %v538 = vsel %vm85, %v525, 0
    %540 = vmatprep.subr.mxu0 0.0
    %541 = vmatpush1.msra.mxu0 0.0
    %542 = vmatprep.subr.mxu0 0.0
    %543 = vmatpush1.msra.mxu0 0.0
    %544 = vmatprep.subr.mxu0 0.0
    %545 = vmatpush1.msra.mxu0 0.0
    %546 = vmatprep.subr.mxu0 0.0
    %547 = vmatpush1.msra.mxu0 0.0
    %548 = vmatprep.subr.mxu0 0.0
    %549 = vmatpush1.msra.mxu0 0.0
    %550 = vmatprep.subr.mxu0 0.0
    %551 = vmatpush1.msra.mxu0 0.0
    %552 = vmatprep.subr.mxu0 0.0
    %553 = vmatpush1.msra.mxu0 0.0
    %554 = vmatprep.subr.mxu0 0.0
    %555 = vmatpush1.msra.mxu0 0.0
    %556 = vmatprep.subr.mxu0 0.0
    %557 = vmatpush1.msra.mxu0 0.0
    %558 = vmatprep.subr.mxu0 0.0
    %559 = vmatpush1.msra.mxu0 0.0
    %560 = vmatprep.subr.mxu0 0.0
    %561 = vmatpush1.msra.mxu0 0.0
    %562 = vmatprep.subr.mxu0 0.0
    %563 = vmatpush1.msra.mxu0 0.0
    %564 = vmatprep.subr.mxu0 0.0
    %565 = vmatpush1.msra.mxu0 %v529
    %566 = vmatprep.subr.mxu0 0.0
    %567 = vmatpush1.msra.mxu0 %v528
    %568 = vmatprep.subr.mxu0 0.0
    %569 = vmatpush1.msra.mxu0 %v527
    %570 = vmatprep.subr.mxu0 0.0
    %571 = vmatpush1.msra.mxu0 %v526
    %572 = vmatprep.subr.mxu0 0.0
    %573 = vmatpush2.msra.mxu0 0.0
    %574 = vmatprep.subr.mxu0 0.0
    %575 = vmatpush2.msra.mxu0 0.0
    %576 = vmatprep.subr.mxu0 0.0
    %577 = vmatpush2.msra.mxu0 0.0
    %578 = vmatprep.subr.mxu0 0.0
    %579 = vmatpush2.msra.mxu0 0.0
    %580 = vmatprep.subr.mxu0 0.0
    %581 = vmatpush2.msra.mxu0 0.0
    %582 = vmatprep.subr.mxu0 0.0
    %583 = vmatpush2.msra.mxu0 0.0
    %584 = vmatprep.subr.mxu0 0.0
    %585 = vmatpush2.msra.mxu0 0.0
    %586 = vmatprep.subr.mxu0 0.0
    %587 = vmatpush2.msra.mxu0 0.0
    %588 = vmatprep.subr.mxu0 0.0
    %589 = vmatpush2.msra.mxu0 0.0
    %590 = vmatprep.subr.mxu0 0.0
    %591 = vmatpush2.msra.mxu0 0.0
    %592 = vmatprep.subr.mxu0 0.0
    %593 = vmatpush2.msra.mxu0 0.0
    %594 = vmatprep.subr.mxu0 0.0
    %595 = vmatpush2.msra.mxu0 0.0
    %596 = vmatprep.subr.mxu0 0.0
    %597 = vmatpush2.msra.mxu0 0.0
    %598 = vmatprep.subr.mxu0 0.0
    %599 = vmatpush2.msra.mxu0 0.0
    %600 = vmatprep.subr.mxu0 0.0
    %601 = vmatpush2.msra.mxu0 0.0
    %602 = vmatprep.subr.mxu0 0.0
    %603 = vmatpush2.msra.mxu0 0.0
    %604 = vmatprep.mubr.f32.mxu0 0.0
    %605 = vmatmul.mubr.f32.gmra.mxu0 %v538
    %v606 = vpop.f32.mrf.mxu0
    %v607 = vadd.f32 %v535, %v606
    %v608 = vpop.f32.mrf.mxu0
    %609 = vdwg.mxu0
    %vm610 = vcmp.ge.f32.partialorder %v607, 0.0
    %v611 = vmul.f32 %v607, 0.01
    %v612 = vsel %vm610, %v607, %v611
    %v613 = vld [vmem:[%s17] sm:$0xff]
    %v614 = vld [vmem:[%s17 + $0x8] sm:$0xff]
    %v615 = vld [vmem:[%s17 + $0x10] sm:$0xff]
    %v616 = vld [vmem:[%s17 + $0x18] sm:$0xff]
    %v617 = vld [vmem:[%s17 + $0x20] sm:$0xff]
    %v618 = vld [vmem:[%s17 + $0x28] sm:$0xff]
    %v619 = vld [vmem:[%s17 + $0x30] sm:$0xff]
    %v620 = vld [vmem:[%s17 + $0x38] sm:$0xff]
    %v621 = vld [vmem:[%s18] sm:$0x1]
    %v623 = vlaneseq
    %v624 = vshrl.u32 %v623, 7
    %v625 = vsub.s32 0, %v624
    %v626 = vrot.slane %v621, %v625
    %v629 = vsel %vm185, %v612, 0
    %631 = vmatprep.subr.mxu0 0.0
    %632 = vmatpush1.msra.mxu0 0.0
    %633 = vmatprep.subr.mxu0 0.0
    %634 = vmatpush1.msra.mxu0 0.0
    %635 = vmatprep.subr.mxu0 0.0
    %636 = vmatpush1.msra.mxu0 0.0
    %637 = vmatprep.subr.mxu0 0.0
    %638 = vmatpush1.msra.mxu0 0.0
    %639 = vmatprep.subr.mxu0 0.0
    %640 = vmatpush1.msra.mxu0 0.0
    %641 = vmatprep.subr.mxu0 0.0
    %642 = vmatpush1.msra.mxu0 0.0
    %643 = vmatprep.subr.mxu0 0.0
    %644 = vmatpush1.msra.mxu0 0.0
    %645 = vmatprep.subr.mxu0 0.0
    %646 = vmatpush1.msra.mxu0 0.0
    %647 = vmatprep.subr.mxu0 0.0
    %648 = vmatpush1.msra.mxu0 %v620
    %649 = vmatprep.subr.mxu0 0.0
    %650 = vmatpush1.msra.mxu0 %v619
    %651 = vmatprep.subr.mxu0 0.0
    %652 = vmatpush1.msra.mxu0 %v618
    %653 = vmatprep.subr.mxu0 0.0
    %654 = vmatpush1.msra.mxu0 %v617
    %655 = vmatprep.subr.mxu0 0.0
    %656 = vmatpush1.msra.mxu0 %v616
    %657 = vmatprep.subr.mxu0 0.0
    %658 = vmatpush1.msra.mxu0 %v615
    %659 = vmatprep.subr.mxu0 0.0
    %660 = vmatpush1.msra.mxu0 %v614
    %661 = vmatprep.subr.mxu0 0.0
    %662 = vmatpush1.msra.mxu0 %v613
    %663 = vmatprep.subr.mxu0 0.0
    %664 = vmatpush2.msra.mxu0 0.0
    %665 = vmatprep.subr.mxu0 0.0
    %666 = vmatpush2.msra.mxu0 0.0
    %667 = vmatprep.subr.mxu0 0.0
    %668 = vmatpush2.msra.mxu0 0.0
    %669 = vmatprep.subr.mxu0 0.0
    %670 = vmatpush2.msra.mxu0 0.0
    %671 = vmatprep.subr.mxu0 0.0
    %672 = vmatpush2.msra.mxu0 0.0
    %673 = vmatprep.subr.mxu0 0.0
    %674 = vmatpush2.msra.mxu0 0.0
    %675 = vmatprep.subr.mxu0 0.0
    %676 = vmatpush2.msra.mxu0 0.0
    %677 = vmatprep.subr.mxu0 0.0
    %678 = vmatpush2.msra.mxu0 0.0
    %679 = vmatprep.subr.mxu0 0.0
    %680 = vmatpush2.msra.mxu0 0.0
    %681 = vmatprep.subr.mxu0 0.0
    %682 = vmatpush2.msra.mxu0 0.0
    %683 = vmatprep.subr.mxu0 0.0
    %684 = vmatpush2.msra.mxu0 0.0
    %685 = vmatprep.subr.mxu0 0.0
    %686 = vmatpush2.msra.mxu0 0.0
    %687 = vmatprep.subr.mxu0 0.0
    %688 = vmatpush2.msra.mxu0 0.0
    %689 = vmatprep.subr.mxu0 0.0
    %690 = vmatpush2.msra.mxu0 0.0
    %691 = vmatprep.subr.mxu0 0.0
    %692 = vmatpush2.msra.mxu0 0.0
    %693 = vmatprep.subr.mxu0 0.0
    %694 = vmatpush2.msra.mxu0 0.0
    %695 = vmatprep.mubr.f32.mxu0 0.0
    %696 = vmatmul.mubr.f32.gmra.mxu0 %v629
    %v697 = vpop.f32.mrf.mxu0
    %v698 = vadd.f32 %v626, %v697
    %v699 = vpop.f32.mrf.mxu0
    %700 = vdwg.mxu0
    %v701 = vxor.u32 %v698, 2147483648
    %v702 = vmul.f32 %v701, 1.442695
    %v703 = vpow.pop %v702
    %v704 = vadd.f32 %v703, 1.0
    %v705 = vrcp.pop %v704
    %v706 = vmul.f32 1.0, %v705
    %707 = vst.msk [vmem:[#allocation2] sm:$0xff] %vm85, %v706
    %708 = vst.msk [vmem:[%s20] sm:$0xff] %vm441, %v343
    %710 = vrot.lane.b32.xlu0 %v424, 8
    %v711 = vpop.permute.xlu0 %710
    %vm713 = vcmask 130112
    %714 = vst.msk [vmem:[%s20] sm:$0xff] %vm713, %v711
    // Predicated region
    $region78: #{cvae_forward.1} parent=1 // pred_check
      _
    $region79: #{cvae_forward.1} parent=1 // pred_check_branch
      %716 = sbr.rel (0) target = $region81
    $region80: #{cvae_forward.1} parent=1 // pred_region
      %s718 = ssub.s32 128, 128
      %719 = vsyncadd [#allocation3], %s718
      %s721 = sshll.u32 [#allocation2], 4
      %s722 = int_to_ptr.vmem [resolvable:$true] %s721
      %724 = dma.vmem_to_hbm [thread:$0]  %s722, 128, %s19, [#allocation3]
    $region81: #{cvae_forward.1} parent=1 // pred_fallthru
      _
    // Predicated region
    $region82: #{cvae_forward.1} parent=1 // pred_check
      _
    $region83: #{cvae_forward.1} parent=1 // pred_check_branch
      %726 = sbr.rel (0) target = $region85
    $region84: #{cvae_forward.1} parent=1 // pred_region
      _
    $region85: #{cvae_forward.1} parent=1 // pred_fallthru
      _
    // Predicated region
    $region86: #{cvae_forward.1} parent=1 // pred_check
      _
    $region87: #{cvae_forward.1} parent=1 // pred_check_branch
      %728 = sbr.rel (0) target = $region89
    $region88: #{cvae_forward.1} parent=1 // pred_region
      %729 = dma.done [#allocation3], 128
    $region89: #{cvae_forward.1} parent=1 // pred_fallthru
      _
    // Predicated region
    $region90: #{cvae_forward.1} parent=1 // pred_check
      _
    $region91: #{cvae_forward.1} parent=1 // pred_check_branch
      %731 = sbr.rel (0) target = $region93
    $region92: #{cvae_forward.1} parent=1 // pred_region
      _
    $region93: #{cvae_forward.1} parent=1 // pred_fallthru
      _
    %732 = vsyncpa [#allocation3], 1

</llo_original>
